<compile_context>
chip_gen: v7x
topology: tpu7x:2x2x1
jax: 0.10.0
libtpu: 0.0.40
codegen_flags: <defaults>
</compile_context>

<pallas_src>
import jax
import jax.numpy as jnp
from jax.experimental import pallas as pl
from jax.experimental.pallas import tpu as pltpu


def _round_up(x, m):
    return ((x + m - 1) // m) * m


# ----------------------------------------------------------------------------
# Tiny-D path: VPU only, lane-dense layout (N on the lane axis).
# ----------------------------------------------------------------------------
def _make_tiny_kernel(D):
    def kernel(h_ref, b_ref, xT_ref, o_ref):
        # h_ref: SMEM (D*D,) holding 0.5*H flattened row-major
        # b_ref: SMEM (D,)
        # xT_ref: VMEM (D, TN)   (N on the lane axis)
        # o_ref:  VMEM (1, TN)   (lane-dense output)
        xf = xT_ref[...].astype(jnp.float32)              # (D, TN)
        out = None
        for i in range(D):                                # D is a small static int
            xi = xf[i:i + 1, :]                           # (1, TN)
            yi = xi * h_ref[i * D + i]                    # diagonal term of 0.5*H
            for j in range(D):
                if j != i:
                    yi = yi + xf[j:j + 1, :] * h_ref[i * D + j]
            yi = yi + b_ref[i]                            # fused linear term
            term = xi * yi
            out = term if out is None else out + term
        o_ref[...] = out.astype(o_ref.dtype)

    return kernel


def _forward_tiny(x, h_half, b, tile_n):
    N, D = x.shape
    if tile_n is None:
        # Largest lane-dense tile <= 1024 that still leaves >= 2 grid steps
        # when N allows it (keeps both TensorCores busy on v7x).
        tile_n = 128 * max(1, min(1024 // 128, N // 256))
    assert tile_n % 128 == 0, "tile_n must be a multiple of 128 (lane width)"
    n_pad = _round_up(N, tile_n)

    xT = jnp.transpose(x)                                 # (D, N)
    if n_pad != N:
        xT = jnp.pad(xT, ((0, 0), (0, n_pad - N)))        # zero cols -> 0 output

    h_flat = h_half.astype(jnp.float32).reshape(-1)       # (D*D,) SMEM scalars
    b_f32 = b.astype(jnp.float32)                         # (D,)   SMEM scalars

    out = pl.pallas_call(
        _make_tiny_kernel(D),
        out_shape=jax.ShapeDtypeStruct((1, n_pad), jnp.float32),
        grid_spec=pltpu.PrefetchScalarGridSpec(
            num_scalar_prefetch=0,
            grid=(n_pad // tile_n,),
            in_specs=[
                pl.BlockSpec(memory_space=pltpu.MemorySpace.SMEM),  # 0.5*H scalars
                pl.BlockSpec(memory_space=pltpu.MemorySpace.SMEM),  # b scalars
                pl.BlockSpec((D, tile_n), lambda i: (0, i)),        # xT tile
            ],
            out_specs=pl.BlockSpec((1, tile_n), lambda i: (0, i)),  # lane-dense out
        ),
        compiler_params=pltpu.CompilerParams(
            dimension_semantics=("parallel",),
        ),
    )(h_flat, b_f32, xT)
    return out.reshape(-1)[:N]


# ----------------------------------------------------------------------------
# General path: MXU matmul, fused linear term, single reduce per tile.
# ----------------------------------------------------------------------------
def _quad_mxu_kernel(x_ref, h_ref, b_ref, o_ref):
    # x_ref: (TN, D); h_ref: (D, D) = 0.5*H; b_ref: (1, D); o_ref: (TN, 1)
    x = x_ref[...]
    # Operands go straight to the MXU (no VPU upcast); f32 accumulation.
    y = jnp.dot(x, h_ref[...], preferred_element_type=jnp.float32)
    y = y + b_ref[...]                                    # fused linear term
    # Single cross-lane reduce per tile.
    o_ref[...] = jnp.sum(
        x.astype(jnp.float32) * y, axis=-1, keepdims=True
    ).astype(o_ref.dtype)


def _forward_mxu(x, h_half, b, tile_n):
    N, D = x.shape
    if tile_n is None:
        tile_n = 512                                      # mem-bound: big tiles
    tile_n = min(tile_n, _round_up(N, 8))
    n_pad = _round_up(N, tile_n)
    if n_pad != N:
        x = jnp.pad(x, ((0, n_pad - N), (0, 0)))          # zero rows -> 0 output

    h_in = h_half.astype(x.dtype)                         # bf16 x => bf16 H (MXU-native)
    b_in = b.reshape(1, D).astype(jnp.float32)

    itemsize = jnp.dtype(x.dtype).itemsize
    # Double-buffered x tile + resident H + output, with headroom.
    vmem_limit = max(
        2 * tile_n * D * itemsize
        + 2 * D * D * jnp.dtype(h_in.dtype).itemsize
        + 4 * tile_n * 4
        + (4 << 20),
        32 << 20,
    )
    # TODO(synk): for very large D (>~2.8K within v7x's 64 MiB VMEM) H should be
    # cast to bf16 and/or K-tiled over a second "arbitrary" grid axis with a
    # scratch accumulator; H/b are grid-invariant so they are DMA'd only once.

    out = pl.pallas_call(
        _quad_mxu_kernel,
        out_shape=jax.ShapeDtypeStruct((n_pad, 1), jnp.float32),
        grid_spec=pltpu.PrefetchScalarGridSpec(
            num_scalar_prefetch=0,
            grid=(n_pad // tile_n,),
            in_specs=[
                pl.BlockSpec((tile_n, D), lambda i: (i, 0)),   # x tile
                pl.BlockSpec((D, D), lambda i: (0, 0)),        # 0.5*H (resident)
                pl.BlockSpec((1, D), lambda i: (0, 0)),        # b (resident)
            ],
            out_specs=pl.BlockSpec((tile_n, 1), lambda i: (i, 0)),
        ),
        compiler_params=pltpu.CompilerParams(
            dimension_semantics=("parallel",),
            vmem_limit_bytes=int(vmem_limit),
        ),
    )(x, h_in, b_in)
    return out.reshape(-1)[:N]


# ----------------------------------------------------------------------------
# Public entry point (DiscretizedQuadratic.forward)
# ----------------------------------------------------------------------------
def discretized_quadratic_forward(x, H, b, *, tile_n=None):
    """0.5 * (x * (x @ H)).sum(-1) + (b * x).sum(-1), computed with Pallas."""
    N, D = x.shape
    assert H.shape == (D, D) and b.shape == (D,)
    h_half = 0.5 * H        # fold the 0.5 into H once, host-side (exact: *2^-1)
    if D <= 8:
        return _forward_tiny(x, h_half, b, tile_n)
    return _forward_mxu(x, h_half, b, tile_n)


def reference_forward(x, H, b):
    xh = jnp.dot(x, H, precision=jax.lax.Precision.HIGHEST)
    return 0.5 * jnp.sum(x * xh, axis=-1) + jnp.sum(b * x, axis=-1)


if __name__ == "__main__":
    key = jax.random.PRNGKey(0)
    k_h, k_b, k_x2, k_h2, k_b2 = jax.random.split(key, 5)

    # ---- Module demo shape: data_dim=2, 16-state 1-D grid --------------------
    data_dim = 2
    num_states = 16
    state_space_1d = jnp.linspace(-2.0, 2.0, num_states, dtype=jnp.float32)

    # H symmetric negative definite so the quadratic defines a proper density.
    A = jax.random.normal(k_h, (data_dim, data_dim), dtype=jnp.float32)
    H = -(A @ A.T + jnp.eye(data_dim, dtype=jnp.float32))
    b = jax.random.normal(k_b, (data_dim,), dtype=jnp.float32)

    # full_state_space = cartesian_prod(state_space_1d, state_space_1d) -> (256, 2)
    g0, g1 = jnp.meshgrid(state_space_1d, state_space_1d, indexing="ij")
    full_state_space = jnp.stack([g0.reshape(-1), g1.reshape(-1)], axis=-1)

    # Hot path: quadratic-form logits via the Pallas kernel (tiny-D VPU path).
    full_ss_logits = discretized_quadratic_forward(full_state_space, H, b)
    full_ss_logits = jax.block_until_ready(full_ss_logits)

    # Glue from __init__: normalize to log-probs.
    full_ss_logprobs = full_ss_logits - jax.nn.logsumexp(full_ss_logits, axis=0)

    ref = reference_forward(full_state_space, H, b)
    assert full_ss_logits.shape == (num_states ** data_dim,)
    assert jnp.allclose(full_ss_logits, ref, atol=1e-5, rtol=1e-5), "tiny-D path mismatch"

    # ---- Exercise the general (MXU) path at a modest larger-D shape ----------
    N2, D2 = 256, 128
    x2 = jax.random.normal(k_x2, (N2, D2), dtype=jnp.float32)
    A2 = jax.random.normal(k_h2, (D2, D2), dtype=jnp.float32) / jnp.sqrt(D2)
    H2 = -(A2 @ A2.T + jnp.eye(D2, dtype=jnp.float32))
    b2 = jax.random.normal(k_b2, (D2,), dtype=jnp.float32)
    # Round inputs to bf16-representable f32 so MXU/XLA matmul-precision
    # differences cannot affect the correctness check.
    x2 = x2.astype(jnp.bfloat16).astype(jnp.float32)
    H2 = H2.astype(jnp.bfloat16).astype(jnp.float32)
    b2 = b2.astype(jnp.bfloat16).astype(jnp.float32)

    out2 = jax.block_until_ready(discretized_quadratic_forward(x2, H2, b2))
    ref2 = reference_forward(x2, H2, b2)
    assert jnp.allclose(out2, ref2, atol=1e-3, rtol=1e-3), "MXU path mismatch"

    # TODO(synk): sampling / idx_lookup / log-marginal bookkeeping from the
    # module are host-side bookkeeping, not part of the kernel hot path.
    print("KERNEL_OK")
</pallas_src>

<mosaic_0001>
module attributes {stable_mosaic.version = 11 : i64} {
  func.func @kernel(%arg0: i32, %arg1: memref<4xf32, #tpu.memory_space<smem>>, %arg2: memref<2xf32, #tpu.memory_space<smem>>, %arg3: memref<2x128xf32, #tpu.memory_space<vmem>>, %arg4: memref<1x128xf32, #tpu.memory_space<vmem>>) attributes {dimension_semantics = [#tpu.dimension_semantics<parallel>], iteration_bounds = array<i64: 2>, scalar_prefetch = 0 : i64, scratch_operands = 0 : i64, tpu.core_type = #tpu.core_type<tc>, window_params = [{transform_indices = @transform_0, window_bounds = array<i64: 4>}, {transform_indices = @transform_1, window_bounds = array<i64: 2>}, {transform_indices = @transform_2, window_bounds = array<i64: 2, 128>}, {transform_indices = @transform_3, window_bounds = array<i64: 1, 128>}]} {
    %c0 = arith.constant 0 : index
    %c0_0 = arith.constant 0 : index
    %0 = vector.load %arg3[%c0, %c0_0] : memref<2x128xf32, #tpu.memory_space<vmem>>, vector<2x128xf32>
    %1 = vector.extract_strided_slice %0 {offsets = [0, 0], sizes = [1, 128], strides = [1, 1]} : vector<2x128xf32> to vector<1x128xf32>
    %c0_1 = arith.constant 0 : index
    %2 = memref.load %arg1[%c0_1] : memref<4xf32, #tpu.memory_space<smem>>
    %3 = vector.broadcast %2 : f32 to vector<1x128xf32>
    %4 = arith.mulf %1, %3 : vector<1x128xf32>
    %5 = vector.extract_strided_slice %0 {offsets = [1, 0], sizes = [1, 128], strides = [1, 1]} : vector<2x128xf32> to vector<1x128xf32>
    %c1 = arith.constant 1 : index
    %6 = memref.load %arg1[%c1] : memref<4xf32, #tpu.memory_space<smem>>
    %7 = vector.broadcast %6 : f32 to vector<1x128xf32>
    %8 = arith.mulf %5, %7 : vector<1x128xf32>
    %9 = arith.addf %4, %8 : vector<1x128xf32>
    %c0_2 = arith.constant 0 : index
    %10 = memref.load %arg2[%c0_2] : memref<2xf32, #tpu.memory_space<smem>>
    %11 = vector.broadcast %10 : f32 to vector<1x128xf32>
    %12 = arith.addf %9, %11 : vector<1x128xf32>
    %13 = arith.mulf %1, %12 : vector<1x128xf32>
    %14 = vector.extract_strided_slice %0 {offsets = [1, 0], sizes = [1, 128], strides = [1, 1]} : vector<2x128xf32> to vector<1x128xf32>
    %c3 = arith.constant 3 : index
    %15 = memref.load %arg1[%c3] : memref<4xf32, #tpu.memory_space<smem>>
    %16 = vector.broadcast %15 : f32 to vector<1x128xf32>
    %17 = arith.mulf %14, %16 : vector<1x128xf32>
    %18 = vector.extract_strided_slice %0 {offsets = [0, 0], sizes = [1, 128], strides = [1, 1]} : vector<2x128xf32> to vector<1x128xf32>
    %c2 = arith.constant 2 : index
    %19 = memref.load %arg1[%c2] : memref<4xf32, #tpu.memory_space<smem>>
    %20 = vector.broadcast %19 : f32 to vector<1x128xf32>
    %21 = arith.mulf %18, %20 : vector<1x128xf32>
    %22 = arith.addf %17, %21 : vector<1x128xf32>
    %c1_3 = arith.constant 1 : index
    %23 = memref.load %arg2[%c1_3] : memref<2xf32, #tpu.memory_space<smem>>
    %24 = vector.broadcast %23 : f32 to vector<1x128xf32>
    %25 = arith.addf %22, %24 : vector<1x128xf32>
    %26 = arith.mulf %14, %25 : vector<1x128xf32>
    %27 = arith.addf %13, %26 : vector<1x128xf32>
    %c0_4 = arith.constant 0 : index
    %c0_5 = arith.constant 0 : index
    %28 = vector.load %arg4[%c0_4, %c0_5] : memref<1x128xf32, #tpu.memory_space<vmem>>, vector<1x128xf32>
    tpu.vector_store %arg4[%c0_4, %c0_5], %27 {strides = array<i32>} : memref<1x128xf32, #tpu.memory_space<vmem>>, vector<1x128xf32>,
    return
  }
  func.func @transform_0(%arg0: i32) -> i32 {
    %c0_i32 = arith.constant 0 : i32
    %c0_i32_0 = arith.constant 0 : i32
    return %c0_i32 : i32
  }
  func.func @transform_1(%arg0: i32) -> i32 {
    %c0_i32 = arith.constant 0 : i32
    %c0_i32_0 = arith.constant 0 : i32
    return %c0_i32 : i32
  }
  func.func @transform_2(%arg0: i32) -> (i32, i32) {
    %c0_i32 = arith.constant 0 : i32
    %c0_i32_0 = arith.constant 0 : i32
    return %c0_i32, %arg0 : i32, i32
  }
  func.func @transform_3(%arg0: i32) -> (i32, i32) {
    %c0_i32 = arith.constant 0 : i32
    %c0_i32_0 = arith.constant 0 : i32
    return %c0_i32, %arg0 : i32, i32
  }
}

</mosaic_0001>

<llo_original>
// kernel: tpu_custom_call.1
$region0: #{tpu_custom_call.1}
  #allocation0 [shape = 'u32[]', space=smem, size = 0x4, offset = 0x4, fixed_abs, tag = 'smem constant byte address 0x4 - core index']
  #allocation1 [shape = 'u32[144,128]{1,0:T(1,128)}', space=vmem, size = 0x12000, scoped, tag = 'internal scratch']
  %s0 = inlined_call_operand.hbm [shape: f32[4], index: 0, kind: input, shape index: {}]
  %s1 = inlined_call_operand.vmem [shape: f32[2], index: 1, kind: input, shape index: {}]
  %s2 = inlined_call_operand.vmem [shape: f32[2,256], index: 2, kind: input, shape index: {}]
  %s3 = inlined_call_operand.hbm [shape: f32[1,256], index: 3, kind: output, shape index: {}]
  %s4 = sld [smem:[#allocation0]]
  $region53: #{tpu_custom_call.1} parent=0
    _
  %s6 = ssub.s32 1, %s4
  %s7 = scalar_select 0, %s6, %s4
  $region1: #{tpu_custom_call.1} parent=0
    #allocation2 [shape = 'u8[512]{0}', space=smem, size = 0x200, scoped, tag = 'input window, operand 0, single buffered']
    #allocation3 [shape = 's32[2]{0}', space=sflag, size = 0x8, scoped, tag = 'scoped memory for tpu_custom_call.1']
    #allocation4 [shape = 's32[2]{0}', space=sflag, size = 0x8, scoped, tag = 'scoped memory for tpu_custom_call.1']
    #allocation5 [shape = 's32[2]{0}', space=sflag, size = 0x8, scoped, tag = 'scoped memory for tpu_custom_call.1']
    #allocation6 [shape = 'u8[512]{0}', space=smem, size = 0x200, scoped, tag = 'input window, operand 1, single buffered']
    #allocation7 [shape = 'u8[1024]{0}', space=vmem, size = 0x400, scoped, tag = 'output window, operand 0']
    %8 = vsyncpa [#allocation4], 0
    %9 = vsyncpa [#allocation5], 0
    %10 = vsyncpa [#allocation3], 0
    %s11 = scalar_lea.sflag [#allocation3], 1
    %12 = vsyncpa %s11, 0
    loop: start=0, step=1, limit=4
    $region2: #{tpu_custom_call.1} parent=1 // loop_pre_header
      _
    $region3: #{tpu_custom_call.1} parent=1 // loop_header
      %s14 = sphi 0, %s18
      %p15 = scmp.ge.s32.totalorder %s14, 4
      %s22 = sphi 0, %s22
      %s24 = sphi 0, %s22
      %s25 = sphi 0, %s24
      %s39 = sphi 0, %s25
      %s43 = sphi 0, %s43
      %s45 = sphi 0, %s43
      %s46 = sphi 0, %s45
      %s60 = sphi 0, %s46
      %s66 = sphi 0, %s68
      %s69 = sphi 0, %s66
      %s70 = sphi 0, %s69
      %s86 = sphi 0, %s70
      %s92 = sphi 0, %s94
      %s95 = sphi 0, %s92
      %s96 = sphi 0, %s95
      %s112 = sphi 0, %s96
    $region4: #{tpu_custom_call.1} parent=1 // loop_header_branch
      %17 = sbr.rel (%p15) target = $region8
    $region5: #{tpu_custom_call.1} parent=1 // loop_body
      %s19 = ssub.s32 %s14, 1
      %s20 = ssub.s32 %s14, 2
      %s21 = sadd.s32 %s14, 1
      %s23 = sadd.s32 %s22, 1
      %p26 = scmp.eq.s32.totalorder %s14, 1
      %p27 = scmp.ne.s32.totalorder %s22, %s24
      %p28 = scmp.eq.s32.totalorder %s14, 0
      %p29 = por %p27, %p28
      %p30 = scmp.ne.s32.totalorder %s22, %s24
      %p31 = scmp.eq.s32.totalorder %s19, 1
      %p32 = por %p30, %p31
      %p33 = scmp.ne.s32.totalorder %s24, %s25
      %p34 = scmp.eq.s32.totalorder %s19, 0
      %p35 = por %p33, %p34
      %p36 = scmp.ne.s32.totalorder %s24, %s25
      %p37 = scmp.eq.s32.totalorder %s20, 1
      %p38 = por %p36, %p37
      %p40 = scmp.ne.s32.totalorder %s25, %s39
      %p41 = scmp.eq.s32.totalorder %s20, 0
      %p42 = por %p40, %p41
      %s44 = sadd.s32 %s43, 1
      %p47 = scmp.eq.s32.totalorder %s14, 1
      %p48 = scmp.ne.s32.totalorder %s43, %s45
      %p49 = scmp.eq.s32.totalorder %s14, 0
      %p50 = por %p48, %p49
      %p51 = scmp.ne.s32.totalorder %s43, %s45
      %p52 = scmp.eq.s32.totalorder %s19, 1
      %p53 = por %p51, %p52
      %p54 = scmp.ne.s32.totalorder %s45, %s46
      %p55 = scmp.eq.s32.totalorder %s19, 0
      %p56 = por %p54, %p55
      %p57 = scmp.ne.s32.totalorder %s45, %s46
      %p58 = scmp.eq.s32.totalorder %s20, 1
      %p59 = por %p57, %p58
      %p61 = scmp.ne.s32.totalorder %s46, %s60
      %p62 = scmp.eq.s32.totalorder %s20, 0
      %p63 = por %p61, %p62
      %s64 = ssub.s32 %s14, %s21
      %p65 = scmp.eq.s32.totalorder %s64, 0
      %s67 = sadd.s32 %s66, 1
      %s68 = scalar_select %p65, %s66, %s67
      %p71 = pneg %p65
      %p72 = scmp.eq.s32.totalorder %s14, 1
      %p73 = por %p71, %p72
      %p74 = scmp.ne.s32.totalorder %s66, %s69
      %p75 = scmp.eq.s32.totalorder %s14, 0
      %p76 = por %p74, %p75
      %p77 = scmp.ne.s32.totalorder %s66, %s69
      %p78 = scmp.eq.s32.totalorder %s19, 1
      %p79 = por %p77, %p78
      %p80 = scmp.ne.s32.totalorder %s69, %s70
      %p81 = scmp.eq.s32.totalorder %s19, 0
      %p82 = por %p80, %p81
      %p83 = scmp.ne.s32.totalorder %s69, %s70
      %p84 = scmp.eq.s32.totalorder %s20, 1
      %p85 = por %p83, %p84
      %p87 = scmp.ne.s32.totalorder %s70, %s86
      %p88 = scmp.eq.s32.totalorder %s20, 0
      %p89 = por %p87, %p88
      %s90 = ssub.s32 %s14, %s21
      %p91 = scmp.eq.s32.totalorder %s90, 0
      %s93 = sadd.s32 %s92, 1
      %s94 = scalar_select %p91, %s92, %s93
      %p97 = pneg %p91
      %p98 = scmp.eq.s32.totalorder %s14, 1
      %p99 = por %p97, %p98
      %p100 = scmp.ne.s32.totalorder %s92, %s95
      %p101 = scmp.eq.s32.totalorder %s14, 0
      %p102 = por %p100, %p101
      %p103 = scmp.ne.s32.totalorder %s92, %s95
      %p104 = scmp.eq.s32.totalorder %s19, 1
      %p105 = por %p103, %p104
      %p106 = scmp.ne.s32.totalorder %s95, %s96
      %p107 = scmp.eq.s32.totalorder %s19, 0
      %p108 = por %p106, %p107
      %p109 = scmp.ne.s32.totalorder %s95, %s96
      %p110 = scmp.eq.s32.totalorder %s20, 1
      %p111 = por %p109, %p110
      %p113 = scmp.ne.s32.totalorder %s96, %s112
      %p114 = scmp.eq.s32.totalorder %s20, 0
      %p115 = por %p113, %p114
      %p116 = scmp.le.s32.totalorder 1, %s14
      %p117 = scmp.lt.s32.totalorder %s14, 3
      %p118 = pnand %p116, %p117
      %p119 = pneg %p118
      // Predicated region
      $region9: #{tpu_custom_call.1} parent=5 // pred_check
        _
      $region10: #{tpu_custom_call.1} parent=5 // pred_check_branch
        %121 = sbr.rel (%p118) target = $region12
      $region11: #{tpu_custom_call.1} parent=5 // pred_region
        %s122 = ssub.s32 %s14, 1
        // Predicated region
        $region13: #{tpu_custom_call.1} parent=11 // pred_check
          %p123 = pneg %p35
        $region14: #{tpu_custom_call.1} parent=11 // pred_check_branch
          %125 = sbr.rel (%p123) target = $region16
        $region15: #{tpu_custom_call.1} parent=11 // pred_region
          %s127 = ssub.s32 16, 16
          %128 = vsyncadd [#allocation4], %s127
          %131 = dma.hbm_to_smem %s0, 16, [#allocation2], [#allocation4]
        $region16: #{tpu_custom_call.1} parent=11 // pred_fallthru
          _
        // Predicated region
        $region17: #{tpu_custom_call.1} parent=11 // pred_check
          %p132 = pneg %p56
        $region18: #{tpu_custom_call.1} parent=11 // pred_check_branch
          %134 = sbr.rel (%p132) target = $region20
        $region19: #{tpu_custom_call.1} parent=11 // pred_region
          %s136 = ssub.s32 16, 16
          %137 = vsyncadd [#allocation5], %s136
          %s139 = sshll.u32 %s1, 4
          %s140 = int_to_ptr.vmem [resolvable:$true] %s139
          %142 = dma.vmem_to_smem %s140, 16, [#allocation6], [#allocation5]
        $region20: #{tpu_custom_call.1} parent=11 // pred_fallthru
          _
      $region12: #{tpu_custom_call.1} parent=5 // pred_fallthru
        _
      %p143 = scmp.lt.s32.totalorder %s14, 2
      // Predicated region
      $region21: #{tpu_custom_call.1} parent=5 // pred_check
        %p144 = pneg %p143
      $region22: #{tpu_custom_call.1} parent=5 // pred_check_branch
        %146 = sbr.rel (%p144) target = $region24
      $region23: #{tpu_custom_call.1} parent=5 // pred_region
        // Predicated region
        $region25: #{tpu_custom_call.1} parent=23 // pred_check
          %p147 = pneg %p76
        $region26: #{tpu_custom_call.1} parent=23 // pred_check_branch
          %149 = sbr.rel (%p147) target = $region28
        $region27: #{tpu_custom_call.1} parent=23 // pred_region
          %p150 = scmp.lt.s32.totalorder %s14, 1
          %s151 = scalar_select %p150, %s14, 1
          %s152 = smul.addr %s151, 2
          %s153 = scalar_lea.vmem %s2, %s152
        $region28: #{tpu_custom_call.1} parent=23 // pred_fallthru
          _
      $region24: #{tpu_custom_call.1} parent=5 // pred_fallthru
        _
      %p154 = scmp.le.s32.totalorder 1, %s14
      %p155 = scmp.lt.s32.totalorder %s14, 3
      %p156 = pnand %p154, %p155
      %p157 = pneg %p156
      // Predicated region
      $region29: #{tpu_custom_call.1} parent=5 // pred_check
        _
      $region30: #{tpu_custom_call.1} parent=5 // pred_check_branch
        %159 = sbr.rel (%p156) target = $region32
      $region31: #{tpu_custom_call.1} parent=5 // pred_region
        %s160 = ssub.s32 %s14, 1
        // Predicated region
        $region33: #{tpu_custom_call.1} parent=31 // pred_check
          %p161 = pneg %p35
        $region34: #{tpu_custom_call.1} parent=31 // pred_check_branch
          %163 = sbr.rel (%p161) target = $region36
        $region35: #{tpu_custom_call.1} parent=31 // pred_region
          %164 = dma.done [#allocation4], 16
        $region36: #{tpu_custom_call.1} parent=31 // pred_fallthru
          _
        // Predicated region
        $region37: #{tpu_custom_call.1} parent=31 // pred_check
          %p165 = pneg %p56
        $region38: #{tpu_custom_call.1} parent=31 // pred_check_branch
          %167 = sbr.rel (%p165) target = $region40
        $region39: #{tpu_custom_call.1} parent=31 // pred_region
          %168 = dma.done [#allocation5], 16
        $region40: #{tpu_custom_call.1} parent=31 // pred_fallthru
          _
        %169 = sfence
        %p170 = pneg %p35
        %p171 = pneg %p32
        %p172 = pneg %p56
        %p173 = pneg %p53
        %p174 = scmp.lt.s32.totalorder %s19, 1
        %s175 = scalar_select %p174, %s19, 1
        %s176 = smul.addr %s175, 2
        %s177 = scalar_lea.vmem %s2, %s176
        %p178 = pneg %p82
        %p179 = pneg %p79
        %p180 = pneg %p108
        %p181 = pneg %p105
        %s182 = sand.u32 %s95, 1
        %s183 = scalar_lea.sflag [#allocation3], %s182
        %s184 = sand.u32 %s95, 1
        %s185 = scalar_lea.vmem [#allocation7], %s184
        %p186 = scmp.lt.s32.totalorder %s19, 1
        %s187 = scalar_select %p186, %s19, 1
        %s188 = smul.addr %s187, 2
        %s189 = scalar_lea.vmem %s2, %s188
        %v190 = vld [vmem:[%s189] sm:$0x3]
        %s191 = sld [smem:[#allocation2]]
        %v192 = vstv %s191
        %v193 = vmul.f32 %v190, %v192
        %s194 = sld [smem:[#allocation2 + $0x1]]
        %v195 = vstv %s194
        %v196 = vmul.f32 %v190, %v195
        %v198 = vrot.slane %v196, 1
        %v200 = vadd.f32 %v193, %v198
        %s201 = sld [smem:[#allocation6]]
        %v202 = vstv %s201
        %v203 = vadd.f32 %v200, %v202
        %v204 = vmul.f32 %v190, %v203
        %s205 = sld [smem:[#allocation2 + $0x3]]
        %v206 = vstv %s205
        %v207 = vmul.f32 %v190, %v206
        %s208 = sld [smem:[#allocation2 + $0x2]]
        %v209 = vstv %s208
        %v210 = vmul.f32 %v190, %v209
        %v212 = vrot.slane %v210, 7
        %v214 = vadd.f32 %v207, %v212
        %s215 = sld [smem:[#allocation6 + $0x1]]
        %v216 = vstv %s215
        %v217 = vadd.f32 %v214, %v216
        %v218 = vmul.f32 %v190, %v217
        %v220 = vrot.slane %v218, 1
        %v222 = vadd.f32 %v204, %v220
        %223 = vst [vmem:[%s185] sm:$0x1] %v222
        %s224 = sand.u32 %s95, 1
        %s225 = scalar_lea.sflag [#allocation3], %s224
        %s226 = sand.u32 %s95, 1
        %s227 = scalar_lea.vmem [#allocation7], %s226
        // Predicated region
        $region41: #{tpu_custom_call.1} parent=31 // pred_check
          %p228 = pneg %p105
        $region42: #{tpu_custom_call.1} parent=31 // pred_check_branch
          %230 = sbr.rel (%p228) target = $region44
        $region43: #{tpu_custom_call.1} parent=31 // pred_region
          %s232 = ssub.s32 16, 16
          %233 = vsyncadd %s225, %s232
          %s234 = smul.addr %s19, 16
          %s235 = scalar_lea.hbm %s3, %s234
          %s237 = sshll.u32 %s227, 4
          %s238 = int_to_ptr.vmem [resolvable:$true] %s237
          %240 = dma.vmem_to_hbm [thread:$0]  %s238, 16, %s235, %s225
        $region44: #{tpu_custom_call.1} parent=31 // pred_fallthru
          _
      $region32: #{tpu_custom_call.1} parent=5 // pred_fallthru
        _
      %p241 = scmp.le.s32.totalorder 2, %s14
      // Predicated region
      $region45: #{tpu_custom_call.1} parent=5 // pred_check
        %p242 = pneg %p241
      $region46: #{tpu_custom_call.1} parent=5 // pred_check_branch
        %244 = sbr.rel (%p242) target = $region48
      $region47: #{tpu_custom_call.1} parent=5 // pred_region
        %s245 = ssub.s32 %s14, 2
        // Predicated region
        $region49: #{tpu_custom_call.1} parent=47 // pred_check
          %p246 = pneg %p111
        $region50: #{tpu_custom_call.1} parent=47 // pred_check_branch
          %248 = sbr.rel (%p246) target = $region52
        $region51: #{tpu_custom_call.1} parent=47 // pred_region
          %s249 = sand.u32 %s96, 1
          %s250 = scalar_lea.sflag [#allocation3], %s249
          %s251 = sand.u32 %s96, 1
          %s252 = scalar_lea.vmem [#allocation7], %s251
          %253 = dma.done %s250, 16
        $region52: #{tpu_custom_call.1} parent=47 // pred_fallthru
          _
      $region48: #{tpu_custom_call.1} parent=5 // pred_fallthru
        _
    $region6: #{tpu_custom_call.1} parent=1 // loop_footer
      %s18 = sadd.s32 1, %s14
    $region7: #{tpu_custom_call.1} parent=1 // loop_footer_branch
      %13 = sbr.rel target = $region3
    $region8: #{tpu_custom_call.1} parent=1 // loop_exit
      _
    %254 = vsyncpa [#allocation3], 1
    %s255 = scalar_lea.sflag [#allocation3], 1
    %256 = vsyncpa %s255, 1
    %257 = vsyncpa [#allocation4], 1
    %s258 = scalar_lea.sflag [#allocation4], 1
    %259 = vsyncpa %s258, 1
    %260 = vsyncpa [#allocation5], 1
    %s261 = scalar_lea.sflag [#allocation5], 1
    %262 = vsyncpa %s261, 1

</llo_original>
